<compile_context>
chip_gen: v7x
topology: tpu7x:2x2x1
jax: 0.10.0
libtpu: 0.0.40
codegen_flags: <defaults>
</compile_context>

<pallas_src>
import jax
import jax.numpy as jnp
from jax.experimental import pallas as pl
from jax.experimental.pallas import tpu as pltpu


_LANE = 128      # TPU lane width: lane-dense output avoids masked partial stores.
_TILE_B = 512    # batch tile (multiple of 8 sublanes); safe for v7x's 64 MiB VMEM.


def _matmul_kernel(x_ref, w_ref, o_ref):
    # Single MXU pass with f32 accumulation; o_ref is already f32, no cast.
    o_ref[...] = jnp.dot(x_ref[...], w_ref[...], preferred_element_type=jnp.float32)


def _forward_flat(x, weight1):
    """Small-batch path: one invocation, whole arrays resident in VMEM.

    At 8x20x20 the kernel is purely launch/DMA-overhead bound, so the grid
    pipeline machinery is dropped and each operand maps as a single VMEM block.
    """
    batch, _ = x.shape
    _, out_f = weight1.shape
    return pl.pallas_call(
        _matmul_kernel,
        out_shape=jax.ShapeDtypeStruct((batch, out_f), jnp.float32),
        in_specs=[
            pl.BlockSpec(memory_space=pltpu.MemorySpace.VMEM),
            pl.BlockSpec(memory_space=pltpu.MemorySpace.VMEM),
        ],
        out_specs=pl.BlockSpec(memory_space=pltpu.MemorySpace.VMEM),
    )(x, weight1)


def _forward_batched(x, weight1, *, tile_b=_TILE_B):
    """Large-batch path: stream x in batch tiles, keep weight1 VMEM-resident.

    Batch axis is "parallel" (uses both TensorCores on v7x). weight1 is
    zero-padded to 128 output lanes so the output store path is lane-dense;
    the padded rows/cols are sliced off afterwards.
    """
    batch, in_f = x.shape
    _, out_f = weight1.shape

    w_pad = jnp.pad(weight1, ((0, 0), (0, _LANE - out_f)))
    pad_b = (-batch) % tile_b
    x_pad = jnp.pad(x, ((0, pad_b), (0, 0))) if pad_b else x
    padded_batch = batch + pad_b

    y_pad = pl.pallas_call(
        _matmul_kernel,
        out_shape=jax.ShapeDtypeStruct((padded_batch, _LANE), jnp.float32),
        grid=(padded_batch // tile_b,),
        in_specs=[
            pl.BlockSpec((tile_b, in_f), lambda i: (i, 0)),
            pl.BlockSpec((in_f, _LANE), lambda i: (0, 0)),  # weight reused every step
        ],
        out_specs=pl.BlockSpec((tile_b, _LANE), lambda i: (i, 0)),
        compiler_params=pltpu.CompilerParams(
            dimension_semantics=("parallel",),
        ),
    )(x_pad, w_pad)
    return y_pad[:batch, :out_f]


def my_model_forward(x, weight1):
    """Pallas forward for MyModel: y = x @ weight1 (weight2 unused)."""
    batch = x.shape[0]
    if batch <= _TILE_B:
        return _forward_flat(x, weight1)
    return _forward_batched(x, weight1)


if __name__ == "__main__":
    key = jax.random.PRNGKey(0)
    k_w1, k_w2, k_x, k_xl = jax.random.split(key, 4)

    # Deterministic parameter init mimicking torch.rand (uniform [0, 1)).
    weight1 = jax.random.uniform(k_w1, (20, 20), dtype=jnp.float32)  # nn.Parameter
    weight2 = jax.random.uniform(k_w2, (20, 20), dtype=jnp.float32)  # non-parameter, unused

    # Small-batch path (flat, un-gridded kernel) — the module's natural size.
    x = jax.random.uniform(k_x, (8, 20), dtype=jnp.float32)
    y = jax.block_until_ready(my_model_forward(x, weight1))
    assert y.shape == (8, 20)
    assert jnp.allclose(y, x @ weight1, atol=1e-5, rtol=1e-5)

    # Batch-tiled path exercised once to validate the scaled-up code path
    # (non-multiple-of-tile batch checks the padding/slicing logic).
    x_large = jax.random.uniform(k_xl, (1032, 20), dtype=jnp.float32)
    y_large = jax.block_until_ready(my_model_forward(x_large, weight1))
    assert y_large.shape == (1032, 20)
    assert jnp.allclose(y_large, x_large @ weight1, atol=1e-4, rtol=1e-4)

    print("KERNEL_OK")
</pallas_src>

<mosaic_0001>
module attributes {stable_mosaic.version = 11 : i64} {
  func.func @_matmul_kernel(%arg0: memref<8x20xf32, #tpu.memory_space<vmem>>, %arg1: memref<20x20xf32, #tpu.memory_space<vmem>>, %arg2: memref<8x20xf32, #tpu.memory_space<vmem>>) attributes {dimension_semantics = [], scalar_prefetch = 0 : i64, scratch_operands = 0 : i64, tpu.core_type = #tpu.core_type<tc>} {
    %c0 = arith.constant 0 : index
    %c0_0 = arith.constant 0 : index
    %0 = vector.load %arg0[%c0, %c0_0] : memref<8x20xf32, #tpu.memory_space<vmem>>, vector<8x20xf32>
    %c0_1 = arith.constant 0 : index
    %c0_2 = arith.constant 0 : index
    %1 = vector.load %arg1[%c0_1, %c0_2] : memref<20x20xf32, #tpu.memory_space<vmem>>, vector<20x20xf32>
    %cst = arith.constant dense<0.000000e+00> : vector<8x20xf32>
    %2 = tpu.matmul %0, %1, %cst {dimension_numbers = #tpu.dot_dimension_numbers<[1], [0], [0], [1], [0, 0, 1, 1], [], []>} : vector<8x20xf32>, vector<20x20xf32>, vector<8x20xf32> -> vector<8x20xf32>
    %c0_3 = arith.constant 0 : index
    %c0_4 = arith.constant 0 : index
    %3 = vector.load %arg2[%c0_3, %c0_4] : memref<8x20xf32, #tpu.memory_space<vmem>>, vector<8x20xf32>
    tpu.vector_store %arg2[%c0_3, %c0_4], %2 {strides = array<i32>} : memref<8x20xf32, #tpu.memory_space<vmem>>, vector<8x20xf32>,
    return
  }
}

</mosaic_0001>

<llo_original>
// kernel: tpu_custom_call.1
$region0: #{tpu_custom_call.1}
  #allocation0 [shape = 'u32[]', space=smem, size = 0x4, offset = 0x4, fixed_abs, tag = 'smem constant byte address 0x4 - core index']
  #allocation1 [shape = 'u32[144,128]{1,0:T(1,128)}', space=vmem, size = 0x12000, scoped, tag = 'internal scratch']
  %s0 = inlined_call_operand.hbm [shape: f32[8,20], index: 0, kind: input, shape index: {}]
  %s1 = inlined_call_operand.hbm [shape: f32[20,20], index: 1, kind: input, shape index: {}]
  %s2 = inlined_call_operand.hbm [shape: f32[8,20], index: 2, kind: output, shape index: {}]
  %s3 = sld [smem:[#allocation0]]
  $region26: #{tpu_custom_call.1} parent=0
    _
  %s5 = ssub.s32 1, %s3
  %s6 = scalar_select 0, %s5, %s3
  $region1: #{tpu_custom_call.1} parent=0
    #allocation2 [shape = 'u8[4096]{0}', space=vmem, size = 0x1000, scoped, tag = 'input window, operand 0, single buffered']
    #allocation3 [shape = 's32[1]{0}', space=sflag, size = 0x4, scoped, tag = 'scoped memory for tpu_custom_call.1']
    #allocation4 [shape = 's32[1]{0}', space=sflag, size = 0x4, scoped, tag = 'scoped memory for tpu_custom_call.1']
    #allocation5 [shape = 'u8[12288]{0}', space=vmem, size = 0x3000, scoped, tag = 'input window, operand 1, single buffered']
    #allocation6 [shape = 's32[1]{0}', space=sflag, size = 0x4, scoped, tag = 'scoped memory for tpu_custom_call.1']
    #allocation7 [shape = 'u8[4096]{0}', space=vmem, size = 0x1000, scoped, tag = 'output window, operand 0, single buffered']
    %7 = vsyncpa [#allocation3], 0
    %8 = vsyncpa [#allocation6], 0
    %9 = vsyncpa [#allocation4], 0
    // Predicated region
    $region2: #{tpu_custom_call.1} parent=1 // pred_check
      _
    $region3: #{tpu_custom_call.1} parent=1 // pred_check_branch
      %11 = sbr.rel (0) target = $region5
    $region4: #{tpu_custom_call.1} parent=1 // pred_region
      %s13 = ssub.s32 128, 128
      %14 = vsyncadd [#allocation3], %s13
      %s16 = sshll.u32 [#allocation2], 4
      %s17 = int_to_ptr.vmem [resolvable:$true] %s16
      %19 = dma.hbm_to_vmem [thread:$0]  %s0, 128, %s17, [#allocation3]
    $region5: #{tpu_custom_call.1} parent=1 // pred_fallthru
      _
    // Predicated region
    $region6: #{tpu_custom_call.1} parent=1 // pred_check
      _
    $region7: #{tpu_custom_call.1} parent=1 // pred_check_branch
      %21 = sbr.rel (0) target = $region9
    $region8: #{tpu_custom_call.1} parent=1 // pred_region
      %s23 = ssub.s32 384, 384
      %24 = vsyncadd [#allocation6], %s23
      %s25 = sshll.u32 [#allocation5], 4
      %s26 = int_to_ptr.vmem [resolvable:$true] %s25
      %31 = dma.hbm_to_vmem [thread:$0]  %s1, 384, %s26, [#allocation6], 128, 128, 8
    $region9: #{tpu_custom_call.1} parent=1 // pred_fallthru
      _
    // Predicated region
    $region10: #{tpu_custom_call.1} parent=1 // pred_check
      _
    $region11: #{tpu_custom_call.1} parent=1 // pred_check_branch
      %33 = sbr.rel (0) target = $region13
    $region12: #{tpu_custom_call.1} parent=1 // pred_region
      %34 = dma.done [#allocation3], 128
    $region13: #{tpu_custom_call.1} parent=1 // pred_fallthru
      _
    // Predicated region
    $region14: #{tpu_custom_call.1} parent=1 // pred_check
      _
    $region15: #{tpu_custom_call.1} parent=1 // pred_check_branch
      %36 = sbr.rel (0) target = $region17
    $region16: #{tpu_custom_call.1} parent=1 // pred_region
      %37 = dma.done [#allocation6], 384
    $region17: #{tpu_custom_call.1} parent=1 // pred_fallthru
      _
    %v38 = vld [vmem:[#allocation2] sm:$0xff]
    %v39 = vld [vmem:[#allocation5] sm:$0xff]
    %v40 = vld [vmem:[#allocation5 + $0x8] sm:$0xff]
    %v41 = vld [vmem:[#allocation5 + $0x10] sm:$0xf]
    %vm42 = vcmask 162816
    %v44 = vsel %vm42, %v38, 0
    %vm46 = vcmask 1043456
    %v48 = vsel %vm46, %v41, 0
    %50 = vmatprep.subr.mxu0 0.0
    %51 = vmatpush1.msra.mxu0 %v39
    %52 = vmatprep.subr.mxu0 0.0
    %53 = vmatpush1.msra.mxu0 %v40
    %54 = vmatprep.subr.mxu0 0.0
    %55 = vmatpush1.msra.mxu0 %v48
    %56 = vmatprep.subr.mxu0 0.0
    %57 = vmatpush1.msra.mxu0 0.0
    %58 = vmatprep.subr.mxu0 0.0
    %59 = vmatpush1.msra.mxu0 0.0
    %60 = vmatprep.subr.mxu0 0.0
    %61 = vmatpush1.msra.mxu0 0.0
    %62 = vmatprep.subr.mxu0 0.0
    %63 = vmatpush1.msra.mxu0 0.0
    %64 = vmatprep.subr.mxu0 0.0
    %65 = vmatpush1.msra.mxu0 0.0
    %66 = vmatprep.subr.mxu0 0.0
    %67 = vmatpush1.msra.mxu0 0.0
    %68 = vmatprep.subr.mxu0 0.0
    %69 = vmatpush1.msra.mxu0 0.0
    %70 = vmatprep.subr.mxu0 0.0
    %71 = vmatpush1.msra.mxu0 0.0
    %72 = vmatprep.subr.mxu0 0.0
    %73 = vmatpush1.msra.mxu0 0.0
    %74 = vmatprep.subr.mxu0 0.0
    %75 = vmatpush1.msra.mxu0 0.0
    %76 = vmatprep.subr.mxu0 0.0
    %77 = vmatpush1.msra.mxu0 0.0
    %78 = vmatprep.subr.mxu0 0.0
    %79 = vmatpush1.msra.mxu0 0.0
    %80 = vmatprep.subr.mxu0 0.0
    %81 = vmatpush1.msra.mxu0 0.0
    %82 = vmatprep.subr.mxu0 0.0
    %83 = vmatpush1.msra.mxu0 0.0
    %84 = vmatprep.subr.mxu0 0.0
    %85 = vmatpush1.msra.mxu0 0.0
    %86 = vmatprep.subr.mxu0 0.0
    %87 = vmatpush1.msra.mxu0 0.0
    %88 = vmatprep.subr.mxu0 0.0
    %89 = vmatpush1.msra.mxu0 0.0
    %90 = vmatprep.subr.mxu0 0.0
    %91 = vmatpush1.msra.mxu0 0.0
    %92 = vmatprep.subr.mxu0 0.0
    %93 = vmatpush1.msra.mxu0 0.0
    %94 = vmatprep.subr.mxu0 0.0
    %95 = vmatpush1.msra.mxu0 0.0
    %96 = vmatprep.subr.mxu0 0.0
    %97 = vmatpush1.msra.mxu0 0.0
    %98 = vmatprep.subr.mxu0 0.0
    %99 = vmatpush1.msra.mxu0 0.0
    %100 = vmatprep.subr.mxu0 0.0
    %101 = vmatpush1.msra.mxu0 0.0
    %102 = vmatprep.subr.mxu0 0.0
    %103 = vmatpush1.msra.mxu0 0.0
    %104 = vmatprep.subr.mxu0 0.0
    %105 = vmatpush1.msra.mxu0 0.0
    %106 = vmatprep.subr.mxu0 0.0
    %107 = vmatpush1.msra.mxu0 0.0
    %108 = vmatprep.subr.mxu0 0.0
    %109 = vmatpush1.msra.mxu0 0.0
    %110 = vmatprep.subr.mxu0 0.0
    %111 = vmatpush1.msra.mxu0 0.0
    %112 = vmatprep.subr.mxu0 0.0
    %113 = vmatpush1.msra.mxu0 0.0
    %114 = vmatprep.mubr.f32.mxu0 0.0
    %115 = vmatmul.mubr.f32.gmra.mrb[0].mxu0 %v44
    %v116 = vpop.f32.mrb[0].mxu0
    %v117 = vadd.f32 0.0, %v116
    %v118 = vpop.f32.mrb[0].mxu0
    %119 = vdwg.mxu0
    %120 = vst.msk [vmem:[#allocation7] sm:$0xff] %vm42, %v117
    // Predicated region
    $region18: #{tpu_custom_call.1} parent=1 // pred_check
      _
    $region19: #{tpu_custom_call.1} parent=1 // pred_check_branch
      %122 = sbr.rel (0) target = $region21
    $region20: #{tpu_custom_call.1} parent=1 // pred_region
      %s124 = ssub.s32 128, 128
      %125 = vsyncadd [#allocation4], %s124
      %s127 = sshll.u32 [#allocation7], 4
      %s128 = int_to_ptr.vmem [resolvable:$true] %s127
      %130 = dma.vmem_to_hbm [thread:$0]  %s128, 128, %s2, [#allocation4]
    $region21: #{tpu_custom_call.1} parent=1 // pred_fallthru
      _
    // Predicated region
    $region22: #{tpu_custom_call.1} parent=1 // pred_check
      _
    $region23: #{tpu_custom_call.1} parent=1 // pred_check_branch
      %132 = sbr.rel (0) target = $region25
    $region24: #{tpu_custom_call.1} parent=1 // pred_region
      %133 = dma.done [#allocation4], 128
    $region25: #{tpu_custom_call.1} parent=1 // pred_fallthru
      _
    %134 = vsyncpa [#allocation3], 1
    %135 = vsyncpa [#allocation6], 1
    %136 = vsyncpa [#allocation4], 1

</llo_original>
